<compile_context>
chip_gen: v5e
topology: v5e:2x2
jax: 0.10.0
libtpu: 0.0.40
codegen_flags: <defaults>
</compile_context>

<pallas_src>
import functools
import math

import jax
import jax.numpy as jnp
from jax import lax
from jax.experimental import pallas as pl
from jax.experimental.pallas import tpu as pltpu


# ----------------------------------------------------------------------------
# VMEM budgets & tile sizing
# ----------------------------------------------------------------------------
def _round_up(v, m):
    return ((v + m - 1) // m) * m


def _per_elem_bytes(itemsize):
    # 2x double-buffered input + 2x double-buffered output (dtype bytes)
    # + ~2 full-block f32 temporaries inside the body (upcast x, f32 result).
    return 4 * itemsize + 8


@functools.lru_cache(maxsize=1)
def _budgets():
    """(block byte budget, vmem_limit cap) — generation aware."""
    cap = 64 << 20  # conservative default (v7x per-TC VMEM)
    try:
        info = pltpu.get_tpu_info()
        cap = int(getattr(info, "vmem_capacity_bytes", cap)) or cap
    except Exception:
        pass
    if cap >= (96 << 20):          # 128 MiB parts (v5e / v6e)
        return 48 << 20, 96 << 20
    return 24 << 20, 48 << 20      # 64 MiB parts (v7x) / unknown


def _vmem_limit(block_elems, itemsize, cap):
    needed = block_elems * _per_elem_bytes(itemsize) + (8 << 20)
    return int(min(max(needed, 32 << 20), cap))


def _row_tile(n_rows, width, itemsize, budget):
    """Row tile for (rows, width) kernels: budget-sized, sublane aligned."""
    sub = 8 * max(1, 4 // max(1, itemsize))          # 8 (f32), 16 (bf16)
    per_row = max(1, width * _per_elem_bytes(itemsize))
    tm = max(sub, (budget // per_row) // sub * sub)
    n_pad = _round_up(n_rows, sub)
    # Keep >= 2 grid steps when the slab is big enough to split (v7x dual-TC).
    if tm >= n_pad and n_pad > 2 * sub:
        tm = _round_up(pl.cdiv(n_pad, 2), sub)
    return min(tm, n_pad)


def _in2d_tiles(b, c, fs, itemsize, budget):
    """(nb, ts) tiles for the (B, C, spatial) channel-norm kernels."""
    per_elem = _per_elem_bytes(itemsize)
    per_col = max(1, c * per_elem)
    ts_cap = max(128, (budget // per_col) // 128 * 128)
    ts = fs if fs <= ts_cap else ts_cap              # full extent or lane multiple
    nb = max(1, budget // max(1, c * ts * per_elem))
    nb = min(nb, b)
    # Keep >= 2 grid steps along a parallel axis when possible (v7x dual-TC).
    if nb >= b and fs <= ts and b > 1:
        nb = max(1, pl.cdiv(b, 2))
    return nb, ts


# ----------------------------------------------------------------------------
# Kernels: normalize over the last (lane) axis, x as (rows, D)
# ----------------------------------------------------------------------------
def _ln_row_kernel(x_ref, w_ref, b_ref, o_ref, *, eps, inv_d):
    x = x_ref[...].astype(jnp.float32)                        # (tm, D)
    s1 = jnp.sum(x, axis=-1, keepdims=True)
    s2 = jnp.sum(x * x, axis=-1, keepdims=True)
    mean = s1 * inv_d
    var = s2 * inv_d - mean * mean
    y = (x - mean) * lax.rsqrt(var + eps) * w_ref[...].astype(jnp.float32) \
        + b_ref[...].astype(jnp.float32)
    o_ref[...] = y.astype(o_ref.dtype)


def _rms_row_kernel(x_ref, w_ref, o_ref, *, eps, inv_d):
    x = x_ref[...].astype(jnp.float32)                        # (tm, D)
    ms = jnp.sum(x * x, axis=-1, keepdims=True) * inv_d
    o_ref[...] = (w_ref[...].astype(jnp.float32) * x
                  * lax.rsqrt(ms + eps)).astype(o_ref.dtype)


# ----------------------------------------------------------------------------
# Kernels: narrow D folded into lanes, x as (rows/k, k*D); stats per D-segment
# ----------------------------------------------------------------------------
def _ln_fold_kernel(x_ref, w_ref, b_ref, o_ref, *, eps, inv_d, k, d):
    tm = x_ref.shape[0]
    x = x_ref[...].astype(jnp.float32).reshape(tm, k, d)      # (tm, k, D)
    s1 = jnp.sum(x, axis=-1, keepdims=True)
    s2 = jnp.sum(x * x, axis=-1, keepdims=True)
    mean = s1 * inv_d
    var = s2 * inv_d - mean * mean
    y = ((x - mean) * lax.rsqrt(var + eps)).reshape(tm, k * d)
    y = y * w_ref[...].astype(jnp.float32) + b_ref[...].astype(jnp.float32)
    o_ref[...] = y.astype(o_ref.dtype)


def _rms_fold_kernel(x_ref, w_ref, o_ref, *, eps, inv_d, k, d):
    tm = x_ref.shape[0]
    x = x_ref[...].astype(jnp.float32).reshape(tm, k, d)      # (tm, k, D)
    ms = jnp.sum(x * x, axis=-1, keepdims=True) * inv_d
    y = (x * lax.rsqrt(ms + eps)).reshape(tm, k * d)
    o_ref[...] = (y * w_ref[...].astype(jnp.float32)).astype(o_ref.dtype)


# ----------------------------------------------------------------------------
# Kernels: normalize over the channel (sublane) axis, x as (nb, C, spatial)
# ----------------------------------------------------------------------------
def _ln_chan_kernel(x_ref, w_ref, b_ref, o_ref, *, eps, inv_c):
    x = x_ref[...].astype(jnp.float32)                        # (nb, C, ts)
    s1 = jnp.sum(x, axis=1, keepdims=True)
    s2 = jnp.sum(x * x, axis=1, keepdims=True)
    mean = s1 * inv_c
    var = s2 * inv_c - mean * mean
    y = (x - mean) * lax.rsqrt(var + eps) * w_ref[...].astype(jnp.float32) \
        + b_ref[...].astype(jnp.float32)
    o_ref[...] = y.astype(o_ref.dtype)


def _rms_chan_kernel(x_ref, w_ref, o_ref, *, eps, inv_c):
    x = x_ref[...].astype(jnp.float32)                        # (nb, C, ts)
    ms = jnp.sum(x * x, axis=1, keepdims=True) * inv_c
    o_ref[...] = (w_ref[...].astype(jnp.float32) * x
                  * lax.rsqrt(ms + eps)).astype(o_ref.dtype)


# ----------------------------------------------------------------------------
# Drivers
# ----------------------------------------------------------------------------
def _rows_call(x2d, weight, bias, eps, rms, fold):
    """pallas_call for a (rows, width) slab; `fold=(k, d)` for folded layout."""
    n, w = x2d.shape
    itemsize = jnp.dtype(x2d.dtype).itemsize
    budget, cap = _budgets()
    tm = _row_tile(n, w, itemsize, budget)
    grid = (pl.cdiv(n, tm),)

    if fold is None:
        inv_d = 1.0 / float(w)
        ln_k = functools.partial(_ln_row_kernel, eps=eps, inv_d=inv_d)
        rms_k = functools.partial(_rms_row_kernel, eps=eps, inv_d=inv_d)
    else:
        k, d = fold
        inv_d = 1.0 / float(d)
        ln_k = functools.partial(_ln_fold_kernel, eps=eps, inv_d=inv_d, k=k, d=d)
        rms_k = functools.partial(_rms_fold_kernel, eps=eps, inv_d=inv_d, k=k, d=d)

    args = [x2d, weight.reshape(1, w)]
    in_specs = [
        pl.BlockSpec((tm, w), lambda i: (i, 0)),
        pl.BlockSpec((1, w), lambda i: (0, 0)),
    ]
    if rms:
        kernel = rms_k
    else:
        kernel = ln_k
        args.append(bias.reshape(1, w))
        in_specs.append(pl.BlockSpec((1, w), lambda i: (0, 0)))

    return pl.pallas_call(
        kernel,
        out_shape=jax.ShapeDtypeStruct((n, w), x2d.dtype),
        grid_spec=pltpu.PrefetchScalarGridSpec(
            num_scalar_prefetch=0,
            grid=grid,
            in_specs=in_specs,
            out_specs=pl.BlockSpec((tm, w), lambda i: (i, 0)),
        ),
        compiler_params=pltpu.CompilerParams(
            dimension_semantics=("parallel",),
            vmem_limit_bytes=_vmem_limit(tm * w, itemsize, cap),
        ),
    )(*args)


def _norm_rows(x2d, weight, bias, eps, rms):
    """Normalize over the last dim of a (rows, D) slab."""
    n, d = x2d.shape
    # Lane-dense fold for narrow D: (N, D) -> (N/k, k*D), k*D a multiple of 128.
    k = 1
    if d < 128:
        k = 128 // math.gcd(d, 128)
        if n % k != 0:
            k = 1
    if k > 1:
        try:
            xf = x2d.reshape(n // k, k * d)
            wf = jnp.tile(weight, k)
            bf = None if rms else jnp.tile(bias, k)
            yf = _rows_call(xf, wf, bf, eps, rms, fold=(k, d))
            return yf.reshape(n, d)
        except Exception:
            # Safety net: if the in-kernel lane-split reshape fails to lower on
            # this generation, fall back to the plain (masked-store) row path.
            pass
    return _rows_call(x2d, weight, bias, eps, rms, fold=None)


def _norm_channels(x3d, weight, bias, eps, rms):
    """Normalize over the channel axis of a (B, C, spatial) slab (in_2d path)."""
    b, c, fs = x3d.shape
    itemsize = jnp.dtype(x3d.dtype).itemsize
    budget, cap = _budgets()
    nb, ts = _in2d_tiles(b, c, fs, itemsize, budget)
    grid = (pl.cdiv(b, nb), pl.cdiv(fs, ts))
    inv_c = 1.0 / float(c)

    args = [x3d, weight.reshape(c, 1)]
    in_specs = [
        pl.BlockSpec((nb, c, ts), lambda i, j: (i, 0, j)),
        pl.BlockSpec((c, 1), lambda i, j: (0, 0)),
    ]
    if rms:
        kernel = functools.partial(_rms_chan_kernel, eps=eps, inv_c=inv_c)
    else:
        kernel = functools.partial(_ln_chan_kernel, eps=eps, inv_c=inv_c)
        args.append(bias.reshape(c, 1))
        in_specs.append(pl.BlockSpec((c, 1), lambda i, j: (0, 0)))

    return pl.pallas_call(
        kernel,
        out_shape=jax.ShapeDtypeStruct((b, c, fs), x3d.dtype),
        grid_spec=pltpu.PrefetchScalarGridSpec(
            num_scalar_prefetch=0,
            grid=grid,
            in_specs=in_specs,
            out_specs=pl.BlockSpec((nb, c, ts), lambda i, j: (i, 0, j)),
        ),
        compiler_params=pltpu.CompilerParams(
            dimension_semantics=("parallel", "parallel"),
            vmem_limit_bytes=_vmem_limit(nb * c * ts, itemsize, cap),
        ),
    )(*args)


# ----------------------------------------------------------------------------
# Module-equivalent wrapper
# ----------------------------------------------------------------------------
class LayerNorm:
    """JAX/Pallas port of front_end.model_misc.LayerNorm (forward only)."""

    def __init__(self, channels, rmsn=False, gn=False, groups=1,
                 eps=1e-12, in_2d=False, dtype=jnp.float32):
        if gn:
            # TODO(synk): gn=True (nn.GroupNorm) branch not implemented in Pallas.
            raise NotImplementedError("gn=True branch not implemented")
        self.channels = channels
        self.rmsn = rmsn
        self.eps = float(eps)
        self.in_2d = in_2d
        # Deterministic parameter init, matching nn.LayerNorm / RMSLayerNorm __init__.
        self.weight = jnp.ones((channels,), dtype=dtype)
        self.bias = None if rmsn else jnp.zeros((channels,), dtype=dtype)

    def __call__(self, x):
        if self.in_2d:
            # x: [B, C, F, S]; PyTorch permutes to NHWC and normalizes over C.
            # Transpose-free: collapse trailing dims, normalize over the channel
            # (sublane) axis with spatial lane-dense.
            b, c, f, s = x.shape
            assert c == self.channels
            x3d = x.reshape(b, c, f * s)
            y3d = _norm_channels(x3d, self.weight, self.bias, self.eps, self.rmsn)
            return y3d.reshape(b, c, f, s)
        else:
            # x: [..., D]  -> normalize over D.
            *lead, d = x.shape
            assert d == self.channels
            x2d = x.reshape(-1, d)
            y2d = _norm_rows(x2d, self.weight, self.bias, self.eps, self.rmsn)
            return y2d.reshape(*lead, d)


# ----------------------------------------------------------------------------
# Pure-JAX references for validation
# ----------------------------------------------------------------------------
def _ref_layernorm(x, w, b, eps):
    mean = jnp.mean(x, axis=-1, keepdims=True)
    var = jnp.mean((x - mean) ** 2, axis=-1, keepdims=True)
    return (x - mean) * lax.rsqrt(var + eps) * w + b


def _ref_rmsnorm(x, w, eps):
    ms = jnp.mean(x * x, axis=-1, keepdims=True)
    return w * x * lax.rsqrt(ms + eps)


if __name__ == "__main__":
    key = jax.random.PRNGKey(0)
    k1, k2, k3, k4 = jax.random.split(key, 4)

    # 1) Default path: [batch=2, seq=8, hidden=32], standard LayerNorm, eps=1e-12.
    #    D=32 < 128 and rows % 4 == 0 -> exercises the lane-dense folded kernel.
    B, S, D = 2, 8, 32
    x = jax.random.normal(k1, (B, S, D), dtype=jnp.float32)
    ln = LayerNorm(D)
    y = jax.block_until_ready(ln(x))
    y_ref = _ref_layernorm(x, ln.weight, ln.bias, ln.eps)
    assert y.shape == x.shape and y.dtype == x.dtype
    assert jnp.allclose(y, y_ref, atol=1e-5, rtol=1e-5)

    # 2) Ragged row count (rows % 4 != 0 -> plain row kernel, padded cdiv grid),
    #    RMS variant.
    x_r = jax.random.normal(k2, (3, 7, D), dtype=jnp.float32)
    ln_r = LayerNorm(D, rmsn=True, eps=1e-6)
    y_r = jax.block_until_ready(ln_r(x_r))
    y_r_ref = _ref_rmsnorm(x_r, ln_r.weight, ln_r.eps)
    assert y_r.shape == x_r.shape
    assert jnp.allclose(y_r, y_r_ref, atol=1e-5, rtol=1e-5)

    # 3) in_2d path, standard LayerNorm over C (transpose-free channel kernel).
    B2, C2, F2, S2 = 2, 4, 16, 16
    x2 = jax.random.normal(k3, (B2, C2, F2, S2), dtype=jnp.float32)
    ln2 = LayerNorm(C2, in_2d=True)
    y2 = jax.block_until_ready(ln2(x2))
    x2_nhwc = jnp.transpose(x2, (0, 2, 3, 1))
    y2_ref = jnp.transpose(
        _ref_layernorm(x2_nhwc, ln2.weight, ln2.bias, ln2.eps), (0, 3, 1, 2))
    assert y2.shape == x2.shape
    assert jnp.allclose(y2, y2_ref, atol=1e-5, rtol=1e-5)

    # 4) in_2d path, RMS variant.
    x3 = jax.random.normal(k4, (B2, C2, F2, S2), dtype=jnp.float32)
    ln3 = LayerNorm(C2, rmsn=True, eps=1e-6, in_2d=True)
    y3 = jax.block_until_ready(ln3(x3))
    x3_nhwc = jnp.transpose(x3, (0, 2, 3, 1))
    y3_ref = jnp.transpose(_ref_rmsnorm(x3_nhwc, ln3.weight, ln3.eps), (0, 3, 1, 2))
    assert y3.shape == x3.shape
    assert jnp.allclose(y3, y3_ref, atol=1e-5, rtol=1e-5)

    print("KERNEL_OK")
</pallas_src>

<mosaic_0001>
module attributes {stable_mosaic.version = 11 : i64} {
  func.func @_ln_fold_kernel(%arg0: i32, %arg1: memref<8x128xf32, #tpu.memory_space<vmem>>, %arg2: memref<1x128xf32, #tpu.memory_space<vmem>>, %arg3: memref<1x128xf32, #tpu.memory_space<vmem>>, %arg4: memref<8x128xf32, #tpu.memory_space<vmem>>) attributes {dimension_semantics = [#tpu.dimension_semantics<parallel>], iteration_bounds = array<i64: 1>, scalar_prefetch = 0 : i64, scratch_operands = 0 : i64, tpu.core_type = #tpu.core_type<tc>, window_params = [{transform_indices = @transform_0, window_bounds = array<i64: 8, 128>}, {pipeline_mode = #tpu.pipeline_mode<synchronous>, transform_indices = @transform_1, window_bounds = array<i64: 1, 128>}, {pipeline_mode = #tpu.pipeline_mode<synchronous>, transform_indices = @transform_2, window_bounds = array<i64: 1, 128>}, {transform_indices = @transform_3, window_bounds = array<i64: 8, 128>}]} {
    %c0 = arith.constant 0 : index
    %c0_0 = arith.constant 0 : index
    %0 = vector.load %arg1[%c0, %c0_0] : memref<8x128xf32, #tpu.memory_space<vmem>>, vector<8x128xf32>
    %1 = vector.shape_cast %0 : vector<8x128xf32> to vector<8x4x32xf32>
    %cst = arith.constant dense<0.000000e+00> : vector<8x4xf32>
    %2 = vector.multi_reduction <add>, %1, %cst [2] : vector<8x4x32xf32> to vector<8x4xf32>
    %3 = vector.shape_cast %2 : vector<8x4xf32> to vector<8x4x1xf32>
    %4 = arith.mulf %1, %1 : vector<8x4x32xf32>
    %cst_1 = arith.constant dense<0.000000e+00> : vector<8x4xf32>
    %5 = vector.multi_reduction <add>, %4, %cst_1 [2] : vector<8x4x32xf32> to vector<8x4xf32>
    %6 = vector.shape_cast %5 : vector<8x4xf32> to vector<8x4x1xf32>
    %cst_2 = arith.constant 3.125000e-02 : f32
    %7 = vector.broadcast %cst_2 : f32 to vector<8x4x1xf32>
    %8 = arith.mulf %3, %7 : vector<8x4x1xf32>
    %cst_3 = arith.constant 3.125000e-02 : f32
    %9 = vector.broadcast %cst_3 : f32 to vector<8x4x1xf32>
    %10 = arith.mulf %6, %9 : vector<8x4x1xf32>
    %11 = arith.mulf %8, %8 : vector<8x4x1xf32>
    %12 = arith.subf %10, %11 : vector<8x4x1xf32>
    %13 = vector.broadcast %8 : vector<8x4x1xf32> to vector<8x4x32xf32>
    %14 = arith.subf %1, %13 : vector<8x4x32xf32>
    %cst_4 = arith.constant 9.99999996E-13 : f32
    %15 = vector.broadcast %cst_4 : f32 to vector<8x4x1xf32>
    %16 = arith.addf %12, %15 : vector<8x4x1xf32>
    %17 = math.rsqrt %16 : vector<8x4x1xf32>
    %18 = vector.broadcast %17 : vector<8x4x1xf32> to vector<8x4x32xf32>
    %19 = arith.mulf %14, %18 : vector<8x4x32xf32>
    %20 = vector.shape_cast %19 : vector<8x4x32xf32> to vector<8x128xf32>
    %c0_5 = arith.constant 0 : index
    %c0_6 = arith.constant 0 : index
    %21 = vector.load %arg2[%c0_5, %c0_6] : memref<1x128xf32, #tpu.memory_space<vmem>>, vector<1x128xf32>
    %22 = vector.broadcast %21 : vector<1x128xf32> to vector<8x128xf32>
    %23 = arith.mulf %20, %22 : vector<8x128xf32>
    %c0_7 = arith.constant 0 : index
    %c0_8 = arith.constant 0 : index
    %24 = vector.load %arg3[%c0_7, %c0_8] : memref<1x128xf32, #tpu.memory_space<vmem>>, vector<1x128xf32>
    %25 = vector.broadcast %24 : vector<1x128xf32> to vector<8x128xf32>
    %26 = arith.addf %23, %25 : vector<8x128xf32>
    %c0_9 = arith.constant 0 : index
    %c0_10 = arith.constant 0 : index
    %27 = vector.load %arg4[%c0_9, %c0_10] : memref<8x128xf32, #tpu.memory_space<vmem>>, vector<8x128xf32>
    tpu.vector_store %arg4[%c0_9, %c0_10], %26 {strides = array<i32>} : memref<8x128xf32, #tpu.memory_space<vmem>>, vector<8x128xf32>,
    return
  }
  func.func @transform_0(%arg0: i32) -> (i32, i32) {
    %c0_i32 = arith.constant 0 : i32
    %c0_i32_0 = arith.constant 0 : i32
    return %arg0, %c0_i32 : i32, i32
  }
  func.func @transform_1(%arg0: i32) -> (i32, i32) {
    %c0_i32 = arith.constant 0 : i32
    %c0_i32_0 = arith.constant 0 : i32
    %c0_i32_1 = arith.constant 0 : i32
    return %c0_i32, %c0_i32_0 : i32, i32
  }
  func.func @transform_2(%arg0: i32) -> (i32, i32) {
    %c0_i32 = arith.constant 0 : i32
    %c0_i32_0 = arith.constant 0 : i32
    %c0_i32_1 = arith.constant 0 : i32
    return %c0_i32, %c0_i32_0 : i32, i32
  }
  func.func @transform_3(%arg0: i32) -> (i32, i32) {
    %c0_i32 = arith.constant 0 : i32
    %c0_i32_0 = arith.constant 0 : i32
    return %arg0, %c0_i32 : i32, i32
  }
}

module attributes {stable_mosaic.version = 11 : i64} {
  func.func @_ln_row_kernel(%arg0: i32, %arg1: memref<16x32xf32, #tpu.memory_space<vmem>>, %arg2: memref<1x32xf32, #tpu.memory_space<vmem>>, %arg3: memref<1x32xf32, #tpu.memory_space<vmem>>, %arg4: memref<16x32xf32, #tpu.memory_space<vmem>>) attributes {dimension_semantics = [#tpu.dimension_semantics<parallel>], iteration_bounds = array<i64: 1>, scalar_prefetch = 0 : i64, scratch_operands = 0 : i64, tpu.core_type = #tpu.core_type<tc>, window_params = [{transform_indices = @transform_0, window_bounds = array<i64: 16, 32>}, {pipeline_mode = #tpu.pipeline_mode<synchronous>, transform_indices = @transform_1, window_bounds = array<i64: 1, 32>}, {pipeline_mode = #tpu.pipeline_mode<synchronous>, transform_indices = @transform_2, window_bounds = array<i64: 1, 32>}, {transform_indices = @transform_3, window_bounds = array<i64: 16, 32>}]} {
    %c0 = arith.constant 0 : index
    %c0_0 = arith.constant 0 : index
    %0 = vector.load %arg1[%c0, %c0_0] : memref<16x32xf32, #tpu.memory_space<vmem>>, vector<16x32xf32>
    %cst = arith.constant dense<0.000000e+00> : vector<16xf32>
    %1 = vector.multi_reduction <add>, %0, %cst [1] : vector<16x32xf32> to vector<16xf32>
    %2 = vector.shape_cast %1 : vector<16xf32> to vector<16x1xf32>
    %3 = arith.mulf %0, %0 : vector<16x32xf32>
    %cst_1 = arith.constant dense<0.000000e+00> : vector<16xf32>
    %4 = vector.multi_reduction <add>, %3, %cst_1 [1] : vector<16x32xf32> to vector<16xf32>
    %5 = vector.shape_cast %4 : vector<16xf32> to vector<16x1xf32>
    %cst_2 = arith.constant 3.125000e-02 : f32
    %6 = vector.broadcast %cst_2 : f32 to vector<16x1xf32>
    %7 = arith.mulf %2, %6 : vector<16x1xf32>
    %cst_3 = arith.constant 3.125000e-02 : f32
    %8 = vector.broadcast %cst_3 : f32 to vector<16x1xf32>
    %9 = arith.mulf %5, %8 : vector<16x1xf32>
    %10 = arith.mulf %7, %7 : vector<16x1xf32>
    %11 = arith.subf %9, %10 : vector<16x1xf32>
    %12 = vector.broadcast %7 : vector<16x1xf32> to vector<16x32xf32>
    %13 = arith.subf %0, %12 : vector<16x32xf32>
    %cst_4 = arith.constant 9.99999996E-13 : f32
    %14 = vector.broadcast %cst_4 : f32 to vector<16x1xf32>
    %15 = arith.addf %11, %14 : vector<16x1xf32>
    %16 = math.rsqrt %15 : vector<16x1xf32>
    %17 = vector.broadcast %16 : vector<16x1xf32> to vector<16x32xf32>
    %18 = arith.mulf %13, %17 : vector<16x32xf32>
    %c0_5 = arith.constant 0 : index
    %c0_6 = arith.constant 0 : index
    %19 = vector.load %arg2[%c0_5, %c0_6] : memref<1x32xf32, #tpu.memory_space<vmem>>, vector<1x32xf32>
    %20 = vector.broadcast %19 : vector<1x32xf32> to vector<16x32xf32>
    %21 = arith.mulf %18, %20 : vector<16x32xf32>
    %c0_7 = arith.constant 0 : index
    %c0_8 = arith.constant 0 : index
    %22 = vector.load %arg3[%c0_7, %c0_8] : memref<1x32xf32, #tpu.memory_space<vmem>>, vector<1x32xf32>
    %23 = vector.broadcast %22 : vector<1x32xf32> to vector<16x32xf32>
    %24 = arith.addf %21, %23 : vector<16x32xf32>
    %c0_9 = arith.constant 0 : index
    %c0_10 = arith.constant 0 : index
    %25 = vector.load %arg4[%c0_9, %c0_10] : memref<16x32xf32, #tpu.memory_space<vmem>>, vector<16x32xf32>
    tpu.vector_store %arg4[%c0_9, %c0_10], %24 {strides = array<i32>} : memref<16x32xf32, #tpu.memory_space<vmem>>, vector<16x32xf32>,
    return
  }
  func.func @transform_0(%arg0: i32) -> (i32, i32) {
    %c0_i32 = arith.constant 0 : i32
    %c0_i32_0 = arith.constant 0 : i32
    return %arg0, %c0_i32 : i32, i32
  }
  func.func @transform_1(%arg0: i32) -> (i32, i32) {
    %c0_i32 = arith.constant 0 : i32
    %c0_i32_0 = arith.constant 0 : i32
    %c0_i32_1 = arith.constant 0 : i32
    return %c0_i32, %c0_i32_0 : i32, i32
  }
  func.func @transform_2(%arg0: i32) -> (i32, i32) {
    %c0_i32 = arith.constant 0 : i32
    %c0_i32_0 = arith.constant 0 : i32
    %c0_i32_1 = arith.constant 0 : i32
    return %c0_i32, %c0_i32_0 : i32, i32
  }
  func.func @transform_3(%arg0: i32) -> (i32, i32) {
    %c0_i32 = arith.constant 0 : i32
    %c0_i32_0 = arith.constant 0 : i32
    return %arg0, %c0_i32 : i32, i32
  }
}

</mosaic_0001>

<llo_original>
// kernel: tpu_custom_call.1
$region0: #{tpu_custom_call.1}
  #allocation0 [shape = 'u32[]', space=smem, size = 0x4, offset = 0x4, fixed_abs, tag = 'smem constant byte address 0x4 - core index']
  #allocation1 [shape = 'u32[72,128]{1,0:T(1,128)}', space=vmem, size = 0x9000, scoped, tag = 'internal scratch']
  %s0 = inlined_call_operand.hbm [shape: f32[4,128], index: 0, kind: input, shape index: {}]
  %s1 = inlined_call_operand.hbm [shape: f32[1,128], index: 1, kind: input, shape index: {}]
  %s2 = inlined_call_operand.vmem [shape: f32[1,128], index: 2, kind: input, shape index: {}]
  %s3 = inlined_call_operand.hbm [shape: f32[4,128], index: 3, kind: output, shape index: {}]
  %s4 = sld [smem:[#allocation0]]
  $region30: #{tpu_custom_call.1} parent=0
    _
  %s6 = ssub.s32 1, %s4
  %s7 = scalar_select 0, %s6, %s4
  $region1: #{tpu_custom_call.1} parent=0
    #allocation2 [shape = 'u8[4096]{0}', space=vmem, size = 0x1000, scoped, tag = 'input window, operand 0, single buffered']
    #allocation3 [shape = 's32[1]{0}', space=sflag, size = 0x4, scoped, tag = 'scoped memory for tpu_custom_call.1']
    #allocation4 [shape = 's32[1]{0}', space=sflag, size = 0x4, scoped, tag = 'scoped memory for tpu_custom_call.1']
    #allocation5 [shape = 'u8[512]{0}', space=vmem, size = 0x400, scoped, tag = 'input window, operand 1, single buffered']
    #allocation6 [shape = 's32[1]{0}', space=sflag, size = 0x4, scoped, tag = 'scoped memory for tpu_custom_call.1']
    #allocation7 [shape = 'u8[4096]{0}', space=vmem, size = 0x1000, scoped, tag = 'output window, operand 0, single buffered']
    %8 = vsyncpa [#allocation3], 0
    %9 = vsyncpa [#allocation6], 0
    %10 = vsyncpa [#allocation4], 0
    // Predicated region
    $region2: #{tpu_custom_call.1} parent=1 // pred_check
      _
    $region3: #{tpu_custom_call.1} parent=1 // pred_check_branch
      %12 = sbr.rel (0) target = $region5
    $region4: #{tpu_custom_call.1} parent=1 // pred_region
      %14 = vsyncadd [#allocation3], 64
      %s15 = sshll.u32 %s0, 4
      %s16 = int_to_ptr.hbm [resolvable:$true] %s15
      %s17 = sshll.u32 [#allocation2], 4
      %s18 = int_to_ptr.vmem [resolvable:$true] %s17
      %23 = dma.hbm_to_vmem [thread:$0]  %s16, 64, %s18, [#allocation3], 64, 64, 4
    $region5: #{tpu_custom_call.1} parent=1 // pred_fallthru
      _
    // Predicated region
    $region6: #{tpu_custom_call.1} parent=1 // pred_check
      _
    $region7: #{tpu_custom_call.1} parent=1 // pred_check_branch
      %25 = sbr.rel (0) target = $region9
    $region8: #{tpu_custom_call.1} parent=1 // pred_region
      %27 = vsyncadd [#allocation6], 0
      %s29 = sshll.u32 %s1, 4
      %s30 = int_to_ptr.hbm [resolvable:$true] %s29
      %s31 = sshll.u32 [#allocation5], 4
      %s32 = int_to_ptr.vmem [resolvable:$true] %s31
      %34 = dma.hbm_to_vmem [thread:$0]  %s30, 16, %s32, [#allocation6]
    $region9: #{tpu_custom_call.1} parent=1 // pred_fallthru
      _
    // Predicated region
    $region10: #{tpu_custom_call.1} parent=1 // pred_check
      _
    $region11: #{tpu_custom_call.1} parent=1 // pred_check_branch
      %36 = sbr.rel (0) target = $region13
    $region12: #{tpu_custom_call.1} parent=1 // pred_region
      _
    $region13: #{tpu_custom_call.1} parent=1 // pred_fallthru
      _
    // Predicated region
    $region14: #{tpu_custom_call.1} parent=1 // pred_check
      _
    $region15: #{tpu_custom_call.1} parent=1 // pred_check_branch
      %38 = sbr.rel (0) target = $region17
    $region16: #{tpu_custom_call.1} parent=1 // pred_region
      %40 = dma.done [#allocation3], 128
    $region17: #{tpu_custom_call.1} parent=1 // pred_fallthru
      _
    // Predicated region
    $region18: #{tpu_custom_call.1} parent=1 // pred_check
      _
    $region19: #{tpu_custom_call.1} parent=1 // pred_check_branch
      %42 = sbr.rel (0) target = $region21
    $region20: #{tpu_custom_call.1} parent=1 // pred_region
      %44 = dma.done [#allocation6], 16
    $region21: #{tpu_custom_call.1} parent=1 // pred_fallthru
      _
    %v45 = vld [vmem:[#allocation2] sm:$0xff]
    %47 = vrot.lane.b32.xlu0 %v45, 96
    %v48 = vpop.permute.xlu0 %47
    %50 = vrot.lane.b32.xlu0 %v45, 64
    %v51 = vpop.permute.xlu0 %50
    %53 = vrot.lane.b32.xlu0 %v45, 32
    %v54 = vpop.permute.xlu0 %53
    %v56 = vrot.slane %v51, 4
    %vm57 = vcmask 1047556
    %v58 = vsel %vm57, %v56, %v45
    %v59 = vrot.slane %v45, 4
    %v60 = vsel %vm57, %v51, %v59
    %v62 = vunpack.c.l.s4 1983009808
    %v63 = vunpack.c.0.s8 %v62
    %v64 = vperm.slane %v58, %v63
    %v66 = vunpack.c.l.s4 1983009808
    %v67 = vunpack.c.0.s8 %v66
    %v68 = vperm.slane %v60, %v67
    %v69 = vrot.slane %v54, 4
    %v70 = vsel %vm57, %v69, %v48
    %v71 = vrot.slane %v48, 4
    %v72 = vsel %vm57, %v54, %v71
    %v74 = vunpack.c.l.s4 1983009808
    %v75 = vunpack.c.0.s8 %v74
    %v76 = vperm.slane %v70, %v75
    %v78 = vunpack.c.l.s4 1983009808
    %v79 = vunpack.c.0.s8 %v78
    %v80 = vperm.slane %v72, %v79
    %v81 = vrot.slane %v76, 4
    %v82 = vsel %vm57, %v81, %v64
    %v83 = vrot.slane %v64, 4
    %v84 = vsel %vm57, %v76, %v83
    %v86 = vunpack.c.l.s4 1934713408
    %v87 = vunpack.c.0.s8 %v86
    %v88 = vperm.slane %v82, %v87
    %v90 = vunpack.c.l.s4 1934713408
    %v91 = vunpack.c.0.s8 %v90
    %v92 = vperm.slane %v84, %v91
    %v93 = vrot.slane %v80, 4
    %v94 = vsel %vm57, %v93, %v68
    %v95 = vrot.slane %v68, 4
    %v96 = vsel %vm57, %v80, %v95
    %v98 = vunpack.c.l.s4 1934713408
    %v99 = vunpack.c.0.s8 %v98
    %v100 = vperm.slane %v94, %v99
    %v102 = vunpack.c.l.s4 1934713408
    %v103 = vunpack.c.0.s8 %v102
    %v104 = vperm.slane %v96, %v103
    %v105 = vrot.slane %v88, 4
    %v106 = vsel %vm57, 0.0, %v105
    %v107 = vrot.slane %v92, 4
    %v108 = vsel %vm57, 0.0, %v107
    %v109 = vrot.slane %v100, 4
    %v110 = vsel %vm57, 0.0, %v109
    %v111 = vrot.slane %v104, 4
    %v112 = vsel %vm57, 0.0, %v111
    %vm113 = vcmask 257024
    %v114 = vsel %vm113, %v88, 0.0
    %115 = vadd.xlane.f32.xlu0 %v114
    %v116 = vpop.xlane.xlu0 %115
    %v117 = vsel %vm113, %v106, 0.0
    %118 = vadd.xlane.f32.xlu0 %v117
    %v119 = vpop.xlane.xlu0 %118
    %v120 = vsel %vm113, %v92, 0.0
    %121 = vadd.xlane.f32.xlu0 %v120
    %v122 = vpop.xlane.xlu0 %121
    %v123 = vsel %vm113, %v108, 0.0
    %124 = vadd.xlane.f32.xlu0 %v123
    %v125 = vpop.xlane.xlu0 %124
    %v126 = vsel %vm113, %v100, 0.0
    %127 = vadd.xlane.f32.xlu0 %v126
    %v128 = vpop.xlane.xlu0 %127
    %v129 = vsel %vm113, %v110, 0.0
    %130 = vadd.xlane.f32.xlu0 %v129
    %v131 = vpop.xlane.xlu0 %130
    %v132 = vsel %vm113, %v104, 0.0
    %133 = vadd.xlane.f32.xlu0 %v132
    %v134 = vpop.xlane.xlu0 %133
    %v135 = vsel %vm113, %v112, 0.0
    %136 = vadd.xlane.f32.xlu0 %v135
    %v137 = vpop.xlane.xlu0 %136
    %v138 = vmul.f32 %v88, %v88
    %v139 = vmul.f32 %v106, %v106
    %v140 = vmul.f32 %v92, %v92
    %v141 = vmul.f32 %v108, %v108
    %v142 = vmul.f32 %v100, %v100
    %v143 = vmul.f32 %v110, %v110
    %v144 = vmul.f32 %v104, %v104
    %v145 = vmul.f32 %v112, %v112
    %v146 = vsel %vm113, %v138, 0.0
    %147 = vadd.xlane.f32.xlu0 %v146
    %v148 = vpop.xlane.xlu0 %147
    %v149 = vsel %vm113, %v139, 0.0
    %150 = vadd.xlane.f32.xlu0 %v149
    %v151 = vpop.xlane.xlu0 %150
    %v152 = vsel %vm113, %v140, 0.0
    %153 = vadd.xlane.f32.xlu0 %v152
    %v154 = vpop.xlane.xlu0 %153
    %v155 = vsel %vm113, %v141, 0.0
    %156 = vadd.xlane.f32.xlu0 %v155
    %v157 = vpop.xlane.xlu0 %156
    %v158 = vsel %vm113, %v142, 0.0
    %159 = vadd.xlane.f32.xlu0 %v158
    %v160 = vpop.xlane.xlu0 %159
    %v161 = vsel %vm113, %v143, 0.0
    %162 = vadd.xlane.f32.xlu0 %v161
    %v163 = vpop.xlane.xlu0 %162
    %v164 = vsel %vm113, %v144, 0.0
    %165 = vadd.xlane.f32.xlu0 %v164
    %v166 = vpop.xlane.xlu0 %165
    %v167 = vsel %vm113, %v145, 0.0
    %168 = vadd.xlane.f32.xlu0 %v167
    %v169 = vpop.xlane.xlu0 %168
    %v170 = vmul.f32 %v116, 0.03125
    %v171 = vmul.f32 %v119, 0.03125
    %v172 = vmul.f32 %v122, 0.03125
    %v173 = vmul.f32 %v125, 0.03125
    %v174 = vmul.f32 %v128, 0.03125
    %v175 = vmul.f32 %v131, 0.03125
    %v176 = vmul.f32 %v134, 0.03125
    %v177 = vmul.f32 %v137, 0.03125
    %v178 = vmul.f32 %v148, 0.03125
    %v179 = vmul.f32 %v151, 0.03125
    %v180 = vmul.f32 %v154, 0.03125
    %v181 = vmul.f32 %v157, 0.03125
    %v182 = vmul.f32 %v160, 0.03125
    %v183 = vmul.f32 %v163, 0.03125
    %v184 = vmul.f32 %v166, 0.03125
    %v185 = vmul.f32 %v169, 0.03125
    %v186 = vmul.f32 %v170, %v170
    %v187 = vmul.f32 %v171, %v171
    %v188 = vmul.f32 %v172, %v172
    %v189 = vmul.f32 %v173, %v173
    %v190 = vmul.f32 %v174, %v174
    %v191 = vmul.f32 %v175, %v175
    %v192 = vmul.f32 %v176, %v176
    %v193 = vmul.f32 %v177, %v177
    %v194 = vsub.f32 %v178, %v186
    %v195 = vsub.f32 %v179, %v187
    %v196 = vsub.f32 %v180, %v188
    %v197 = vsub.f32 %v181, %v189
    %v198 = vsub.f32 %v182, %v190
    %v199 = vsub.f32 %v183, %v191
    %v200 = vsub.f32 %v184, %v192
    %v201 = vsub.f32 %v185, %v193
    %v202 = vsub.f32 %v88, %v170
    %v203 = vsub.f32 %v106, %v171
    %v204 = vsub.f32 %v92, %v172
    %v205 = vsub.f32 %v108, %v173
    %v206 = vsub.f32 %v100, %v174
    %v207 = vsub.f32 %v110, %v175
    %v208 = vsub.f32 %v104, %v176
    %v209 = vsub.f32 %v112, %v177
    %v210 = vadd.f32 %v194, 1e-12
    %v211 = vadd.f32 %v195, 1e-12
    %v212 = vadd.f32 %v196, 1e-12
    %v213 = vadd.f32 %v197, 1e-12
    %v214 = vadd.f32 %v198, 1e-12
    %v215 = vadd.f32 %v199, 1e-12
    %v216 = vadd.f32 %v200, 1e-12
    %v217 = vadd.f32 %v201, 1e-12
    %v218 = vrsqrt.pop %v210
    %v219 = vmul.f32 %v218, %v210
    %v220 = vmul.f32 %v219, %v218
    %v221 = vmul.f32 0.5, %v220
    %v222 = vsub.f32 1.5, %v221
    %v223 = vmul.f32 %v218, %v222
    %vm224 = vweird.f32 %v210
    %vm225 = vweird.f32 %v218
    %vm226 = vmor %vm224, %vm225
    %v227 = vsel %vm226, %v218, %v223
    %v228 = vrsqrt.pop %v211
    %v229 = vmul.f32 %v228, %v211
    %v230 = vmul.f32 %v229, %v228
    %v231 = vmul.f32 0.5, %v230
    %v232 = vsub.f32 1.5, %v231
    %v233 = vmul.f32 %v228, %v232
    %vm234 = vweird.f32 %v211
    %vm235 = vweird.f32 %v228
    %vm236 = vmor %vm234, %vm235
    %v237 = vsel %vm236, %v228, %v233
    %v238 = vrsqrt.pop %v212
    %v239 = vmul.f32 %v238, %v212
    %v240 = vmul.f32 %v239, %v238
    %v241 = vmul.f32 0.5, %v240
    %v242 = vsub.f32 1.5, %v241
    %v243 = vmul.f32 %v238, %v242
    %vm244 = vweird.f32 %v212
    %vm245 = vweird.f32 %v238
    %vm246 = vmor %vm244, %vm245
    %v247 = vsel %vm246, %v238, %v243
    %v248 = vrsqrt.pop %v213
    %v249 = vmul.f32 %v248, %v213
    %v250 = vmul.f32 %v249, %v248
    %v251 = vmul.f32 0.5, %v250
    %v252 = vsub.f32 1.5, %v251
    %v253 = vmul.f32 %v248, %v252
    %vm254 = vweird.f32 %v213
    %vm255 = vweird.f32 %v248
    %vm256 = vmor %vm254, %vm255
    %v257 = vsel %vm256, %v248, %v253
    %v258 = vrsqrt.pop %v214
    %v259 = vmul.f32 %v258, %v214
    %v260 = vmul.f32 %v259, %v258
    %v261 = vmul.f32 0.5, %v260
    %v262 = vsub.f32 1.5, %v261
    %v263 = vmul.f32 %v258, %v262
    %vm264 = vweird.f32 %v214
    %vm265 = vweird.f32 %v258
    %vm266 = vmor %vm264, %vm265
    %v267 = vsel %vm266, %v258, %v263
    %v268 = vrsqrt.pop %v215
    %v269 = vmul.f32 %v268, %v215
    %v270 = vmul.f32 %v269, %v268
    %v271 = vmul.f32 0.5, %v270
    %v272 = vsub.f32 1.5, %v271
    %v273 = vmul.f32 %v268, %v272
    %vm274 = vweird.f32 %v215
    %vm275 = vweird.f32 %v268
    %vm276 = vmor %vm274, %vm275
    %v277 = vsel %vm276, %v268, %v273
    %v278 = vrsqrt.pop %v216
    %v279 = vmul.f32 %v278, %v216
    %v280 = vmul.f32 %v279, %v278
    %v281 = vmul.f32 0.5, %v280
    %v282 = vsub.f32 1.5, %v281
    %v283 = vmul.f32 %v278, %v282
    %vm284 = vweird.f32 %v216
    %vm285 = vweird.f32 %v278
    %vm286 = vmor %vm284, %vm285
    %v287 = vsel %vm286, %v278, %v283
    %v288 = vrsqrt.pop %v217
    %v289 = vmul.f32 %v288, %v217
    %v290 = vmul.f32 %v289, %v288
    %v291 = vmul.f32 0.5, %v290
    %v292 = vsub.f32 1.5, %v291
    %v293 = vmul.f32 %v288, %v292
    %vm294 = vweird.f32 %v217
    %vm295 = vweird.f32 %v288
    %vm296 = vmor %vm294, %vm295
    %v297 = vsel %vm296, %v288, %v293
    %v298 = vmul.f32 %v202, %v227
    %v299 = vmul.f32 %v203, %v237
    %v300 = vmul.f32 %v204, %v247
    %v301 = vmul.f32 %v205, %v257
    %v302 = vmul.f32 %v206, %v267
    %v303 = vmul.f32 %v207, %v277
    %v304 = vmul.f32 %v208, %v287
    %v305 = vmul.f32 %v209, %v297
    %v306 = vrot.slane %v300, 4
    %v307 = vsel %vm57, %v306, %v298
    %v309 = vunpack.c.l.s4 1983009808
    %v310 = vunpack.c.0.s8 %v309
    %v311 = vperm.slane %v307, %v310
    %v312 = vrot.slane %v301, 4
    %v313 = vsel %vm57, %v312, %v299
    %v315 = vunpack.c.l.s4 1983009808
    %v316 = vunpack.c.0.s8 %v315
    %v317 = vperm.slane %v313, %v316
    %v318 = vrot.slane %v304, 4
    %v319 = vsel %vm57, %v318, %v302
    %v321 = vunpack.c.l.s4 1983009808
    %v322 = vunpack.c.0.s8 %v321
    %v323 = vperm.slane %v319, %v322
    %v324 = vrot.slane %v305, 4
    %v325 = vsel %vm57, %v324, %v303
    %v327 = vunpack.c.l.s4 1983009808
    %v328 = vunpack.c.0.s8 %v327
    %v329 = vperm.slane %v325, %v328
    %v330 = vrot.slane %v317, 4
    %v331 = vsel %vm57, %v330, %v311
    %v332 = vrot.slane %v311, 4
    %v333 = vsel %vm57, %v317, %v332
    %v335 = vunpack.c.l.s4 1934713408
    %v336 = vunpack.c.0.s8 %v335
    %v337 = vperm.slane %v331, %v336
    %v339 = vunpack.c.l.s4 1934713408
    %v340 = vunpack.c.0.s8 %v339
    %v341 = vperm.slane %v333, %v340
    %v342 = vrot.slane %v329, 4
    %v343 = vsel %vm57, %v342, %v323
    %v344 = vrot.slane %v323, 4
    %v345 = vsel %vm57, %v329, %v344
    %v347 = vunpack.c.l.s4 1934713408
    %v348 = vunpack.c.0.s8 %v347
    %v349 = vperm.slane %v343, %v348
    %v351 = vunpack.c.l.s4 1934713408
    %v352 = vunpack.c.0.s8 %v351
    %v353 = vperm.slane %v345, %v352
    %v354 = vrot.slane %v349, 4
    %v355 = vsel %vm57, %v354, %v337
    %v356 = vrot.slane %v337, 4
    %v357 = vsel %vm57, %v349, %v356
    %v358 = vrot.slane %v353, 4
    %v359 = vsel %vm57, %v358, %v341
    %v360 = vrot.slane %v341, 4
    %v361 = vsel %vm57, %v353, %v360
    %363 = vrot.lane.b32.xlu0 %v357, 32
    %v364 = vpop.permute.xlu0 %363
    %367 = vrot.lane.b32.xlu0 %v359, 64
    %v368 = vpop.permute.xlu0 %367
    %371 = vrot.lane.b32.xlu0 %v361, 96
    %v372 = vpop.permute.xlu0 %371
    %vm374 = vcmask 261120
    %v375 = vsel %vm374, %v355, %v364
    %vm376 = vcmask 523264
    %v377 = vsel %vm376, %v375, %v368
    %vm378 = vcmask 785408
    %v379 = vsel %vm378, %v377, %v372
    %v380 = vld [vmem:[#allocation5] sm:$0x1]
    %v382 = vperm.slane %v380, 0
    %v384 = vmul.f32 %v379, %v382
    %v385 = vld [vmem:[%s2] sm:$0x1]
    %v387 = vperm.slane %v385, 0
    %v389 = vadd.f32 %v384, %v387
    %390 = vst [vmem:[#allocation7] sm:$0xff] %v389
    // Predicated region
    $region22: #{tpu_custom_call.1} parent=1 // pred_check
      _
    $region23: #{tpu_custom_call.1} parent=1 // pred_check_branch
      %392 = sbr.rel (0) target = $region25
    $region24: #{tpu_custom_call.1} parent=1 // pred_region
      %394 = vsyncadd [#allocation4], 64
      %s395 = sshll.u32 [#allocation7], 4
      %s396 = int_to_ptr.vmem [resolvable:$true] %s395
      %s397 = sshll.u32 %s3, 4
      %s398 = int_to_ptr.hbm [resolvable:$true] %s397
      %403 = dma.vmem_to_hbm [thread:$0]  %s396, 64, %s398, [#allocation4], 64, 64, 4
    $region25: #{tpu_custom_call.1} parent=1 // pred_fallthru
      _
    // Predicated region
    $region26: #{tpu_custom_call.1} parent=1 // pred_check
      _
    $region27: #{tpu_custom_call.1} parent=1 // pred_check_branch
      %405 = sbr.rel (0) target = $region29
    $region28: #{tpu_custom_call.1} parent=1 // pred_region
      %407 = dma.done [#allocation4], 128
    $region29: #{tpu_custom_call.1} parent=1 // pred_fallthru
      _
    %408 = vsyncpa [#allocation3], 1
    %409 = vsyncpa [#allocation6], 1
    %410 = vsyncpa [#allocation4], 1

// kernel: tpu_custom_call.1
$region0: #{tpu_custom_call.1}
  #allocation0 [shape = 'u32[]', space=smem, size = 0x4, offset = 0x4, fixed_abs, tag = 'smem constant byte address 0x4 - core index']
  #allocation1 [shape = 'u32[72,128]{1,0:T(1,128)}', space=vmem, size = 0x9000, scoped, tag = 'internal scratch']
  %s0 = inlined_call_operand.hbm [shape: f32[16,32], index: 0, kind: input, shape index: {}]
  %s1 = inlined_call_operand.hbm [shape: f32[1,32], index: 1, kind: input, shape index: {}]
  %s2 = inlined_call_operand.vmem [shape: f32[1,32], index: 2, kind: input, shape index: {}]
  %s3 = inlined_call_operand.hbm [shape: f32[16,32], index: 3, kind: output, shape index: {}]
  %s4 = sld [smem:[#allocation0]]
  $region30: #{tpu_custom_call.1} parent=0
    _
  %s6 = ssub.s32 1, %s4
  %s7 = scalar_select 0, %s6, %s4
  $region1: #{tpu_custom_call.1} parent=0
    #allocation2 [shape = 'u8[8192]{0}', space=vmem, size = 0x2000, scoped, tag = 'input window, operand 0, single buffered']
    #allocation3 [shape = 's32[1]{0}', space=sflag, size = 0x4, scoped, tag = 'scoped memory for tpu_custom_call.1']
    #allocation4 [shape = 's32[1]{0}', space=sflag, size = 0x4, scoped, tag = 'scoped memory for tpu_custom_call.1']
    #allocation5 [shape = 'u8[512]{0}', space=vmem, size = 0x400, scoped, tag = 'input window, operand 1, single buffered']
    #allocation6 [shape = 's32[1]{0}', space=sflag, size = 0x4, scoped, tag = 'scoped memory for tpu_custom_call.1']
    #allocation7 [shape = 'u8[8192]{0}', space=vmem, size = 0x2000, scoped, tag = 'output window, operand 0, single buffered']
    %8 = vsyncpa [#allocation3], 0
    %9 = vsyncpa [#allocation6], 0
    %10 = vsyncpa [#allocation4], 0
    // Predicated region
    $region2: #{tpu_custom_call.1} parent=1 // pred_check
      _
    $region3: #{tpu_custom_call.1} parent=1 // pred_check_branch
      %12 = sbr.rel (0) target = $region5
    $region4: #{tpu_custom_call.1} parent=1 // pred_region
      %14 = vsyncadd [#allocation3], 0
      %s15 = sshll.u32 %s0, 4
      %s16 = int_to_ptr.hbm [resolvable:$true] %s15
      %s17 = sshll.u32 [#allocation2], 4
      %s18 = int_to_ptr.vmem [resolvable:$true] %s17
      %23 = dma.hbm_to_vmem [thread:$0]  %s16, 256, %s18, [#allocation3], 128, 128, 8
    $region5: #{tpu_custom_call.1} parent=1 // pred_fallthru
      _
    // Predicated region
    $region6: #{tpu_custom_call.1} parent=1 // pred_check
      _
    $region7: #{tpu_custom_call.1} parent=1 // pred_check_branch
      %25 = sbr.rel (0) target = $region9
    $region8: #{tpu_custom_call.1} parent=1 // pred_region
      %27 = vsyncadd [#allocation6], 0
      %s29 = sshll.u32 %s1, 4
      %s30 = int_to_ptr.hbm [resolvable:$true] %s29
      %s31 = sshll.u32 [#allocation5], 4
      %s32 = int_to_ptr.vmem [resolvable:$true] %s31
      %34 = dma.hbm_to_vmem [thread:$0]  %s30, 16, %s32, [#allocation6]
    $region9: #{tpu_custom_call.1} parent=1 // pred_fallthru
      _
    // Predicated region
    $region10: #{tpu_custom_call.1} parent=1 // pred_check
      _
    $region11: #{tpu_custom_call.1} parent=1 // pred_check_branch
      %36 = sbr.rel (0) target = $region13
    $region12: #{tpu_custom_call.1} parent=1 // pred_region
      _
    $region13: #{tpu_custom_call.1} parent=1 // pred_fallthru
      _
    // Predicated region
    $region14: #{tpu_custom_call.1} parent=1 // pred_check
      _
    $region15: #{tpu_custom_call.1} parent=1 // pred_check_branch
      %38 = sbr.rel (0) target = $region17
    $region16: #{tpu_custom_call.1} parent=1 // pred_region
      %40 = dma.done [#allocation3], 256
    $region17: #{tpu_custom_call.1} parent=1 // pred_fallthru
      _
    // Predicated region
    $region18: #{tpu_custom_call.1} parent=1 // pred_check
      _
    $region19: #{tpu_custom_call.1} parent=1 // pred_check_branch
      %42 = sbr.rel (0) target = $region21
    $region20: #{tpu_custom_call.1} parent=1 // pred_region
      %44 = dma.done [#allocation6], 16
    $region21: #{tpu_custom_call.1} parent=1 // pred_fallthru
      _
    %v45 = vld [vmem:[#allocation2] sm:$0xff]
    %v46 = vld [vmem:[#allocation2 + $0x8] sm:$0xff]
    %vm47 = vcmask 261120
    %v48 = vsel %vm47, %v45, 0.0
    %49 = vadd.xlane.f32.xlu0 %v48
    %v50 = vpop.xlane.xlu0 %49
    %v51 = vsel %vm47, %v46, 0.0
    %52 = vadd.xlane.f32.xlu0 %v51
    %v53 = vpop.xlane.xlu0 %52
    %v54 = vmul.f32 %v45, %v45
    %v55 = vmul.f32 %v46, %v46
    %v56 = vsel %vm47, %v54, 0.0
    %57 = vadd.xlane.f32.xlu0 %v56
    %v58 = vpop.xlane.xlu0 %57
    %v59 = vsel %vm47, %v55, 0.0
    %60 = vadd.xlane.f32.xlu0 %v59
    %v61 = vpop.xlane.xlu0 %60
    %v62 = vmul.f32 %v50, 0.03125
    %v63 = vmul.f32 %v53, 0.03125
    %v64 = vmul.f32 %v58, 0.03125
    %v65 = vmul.f32 %v61, 0.03125
    %v66 = vmul.f32 %v62, %v62
    %v67 = vmul.f32 %v63, %v63
    %v68 = vsub.f32 %v64, %v66
    %v69 = vsub.f32 %v65, %v67
    %v70 = vsub.f32 %v45, %v62
    %v71 = vsub.f32 %v46, %v63
    %v72 = vadd.f32 %v68, 1e-12
    %v73 = vadd.f32 %v69, 1e-12
    %v74 = vrsqrt.pop %v72
    %v75 = vmul.f32 %v74, %v72
    %v76 = vmul.f32 %v75, %v74
    %v77 = vmul.f32 0.5, %v76
    %v78 = vsub.f32 1.5, %v77
    %v79 = vmul.f32 %v74, %v78
    %vm80 = vweird.f32 %v72
    %vm81 = vweird.f32 %v74
    %vm82 = vmor %vm80, %vm81
    %v83 = vsel %vm82, %v74, %v79
    %v84 = vrsqrt.pop %v73
    %v85 = vmul.f32 %v84, %v73
    %v86 = vmul.f32 %v85, %v84
    %v87 = vmul.f32 0.5, %v86
    %v88 = vsub.f32 1.5, %v87
    %v89 = vmul.f32 %v84, %v88
    %vm90 = vweird.f32 %v73
    %vm91 = vweird.f32 %v84
    %vm92 = vmor %vm90, %vm91
    %v93 = vsel %vm92, %v84, %v89
    %v94 = vmul.f32 %v70, %v83
    %v95 = vmul.f32 %v71, %v93
    %v96 = vld [vmem:[#allocation5] sm:$0x1]
    %v98 = vperm.slane %v96, 0
    %v100 = vmul.f32 %v94, %v98
    %v101 = vmul.f32 %v95, %v98
    %v102 = vld [vmem:[%s2] sm:$0x1]
    %v104 = vperm.slane %v102, 0
    %v106 = vadd.f32 %v100, %v104
    %v107 = vadd.f32 %v101, %v104
    %108 = vst.msk [vmem:[#allocation7] sm:$0xff] %vm47, %v106
    %109 = vst.msk [vmem:[#allocation7 + $0x8] sm:$0xff] %vm47, %v107
    // Predicated region
    $region22: #{tpu_custom_call.1} parent=1 // pred_check
      _
    $region23: #{tpu_custom_call.1} parent=1 // pred_check_branch
      %111 = sbr.rel (0) target = $region25
    $region24: #{tpu_custom_call.1} parent=1 // pred_region
      %113 = vsyncadd [#allocation4], 0
      %s114 = sshll.u32 [#allocation7], 4
      %s115 = int_to_ptr.vmem [resolvable:$true] %s114
      %s116 = sshll.u32 %s3, 4
      %s117 = int_to_ptr.hbm [resolvable:$true] %s116
      %122 = dma.vmem_to_hbm [thread:$0]  %s115, 256, %s117, [#allocation4], 128, 128, 8
    $region25: #{tpu_custom_call.1} parent=1 // pred_fallthru
      _
    // Predicated region
    $region26: #{tpu_custom_call.1} parent=1 // pred_check
      _
    $region27: #{tpu_custom_call.1} parent=1 // pred_check_branch
      %124 = sbr.rel (0) target = $region29
    $region28: #{tpu_custom_call.1} parent=1 // pred_region
      %126 = dma.done [#allocation4], 256
    $region29: #{tpu_custom_call.1} parent=1 // pred_fallthru
      _
    %127 = vsyncpa [#allocation3], 1
    %128 = vsyncpa [#allocation6], 1
    %129 = vsyncpa [#allocation4], 1

</llo_original>
